<compile_context>
chip_gen: v7x
topology: tpu7x:2x2x1
jax: 0.10.0
libtpu: 0.0.40
codegen_flags: <defaults>
</compile_context>

<pallas_src>
import functools

import jax
import jax.numpy as jnp
from jax.experimental import pallas as pl
from jax.experimental.pallas import tpu as pltpu


def _round_up(x, m):
    return ((x + m - 1) // m) * m


def _sublane_multiple(dtype):
    # Sub-32-bit dtypes pack along sublanes: 8 rows (f32), 16 (bf16), 32 (int8/fp8).
    itemsize = jnp.dtype(dtype).itemsize
    return {4: 8, 2: 16, 1: 32}.get(itemsize, 8)


def _vmem_budget_bytes():
    # Generation-aware per-TensorCore VMEM cap (v7x: 64 MiB, v5e/v6e: 128 MiB),
    # keeping ~12 MiB slack for the compiler.
    try:
        cap = pltpu.get_tpu_info().vmem_capacity_bytes
    except Exception:
        cap = 64 << 20  # conservative fallback (v7x-sized)
    return max(32 << 20, cap - (12 << 20))


def _select_nk_tiles(n, k):
    # (8,128)-aligned, MXU-friendly tile faces; tn/tk depend only on the weight
    # shape so the prepped (padded, transposed) weight can be cached per layer.
    tn = min(1024, _round_up(n, 128))
    tk = min(1024, _round_up(k, 128))
    return tn, tk


# ---------------------------------------------------------------------------
# Kernels
# ---------------------------------------------------------------------------

def _linear_kernel_acc(x_ref, w_ref, b_ref, o_ref, acc_ref):
    # x_ref : [tm, tk]   w_ref : [tk, tn]   b_ref : [1, tn]
    # o_ref : [tm, tn]   acc_ref : [tm, tn] f32 scratch (resident across K)
    k = pl.program_id(2)

    prod = jnp.dot(x_ref[...], w_ref[...], preferred_element_type=jnp.float32)

    @pl.when(k == 0)
    def _():
        acc_ref[...] = prod          # no separate zero-init store

    @pl.when(k != 0)
    def _():
        acc_ref[...] += prod

    @pl.when(k == pl.num_programs(2) - 1)
    def _():
        o_ref[...] = (
            acc_ref[...] + b_ref[...].astype(jnp.float32)
        ).astype(o_ref.dtype)


def _linear_kernel_single_k(x_ref, w_ref, b_ref, o_ref):
    # Whole K in one step: no accumulator scratch needed.
    o_ref[...] = (
        jnp.dot(x_ref[...], w_ref[...], preferred_element_type=jnp.float32)
        + b_ref[...].astype(jnp.float32)
    ).astype(o_ref.dtype)


# ---------------------------------------------------------------------------
# Wrapper
# ---------------------------------------------------------------------------

def prepare_linear_params(weight, bias=None, dtype=None):
    """One-time weight prep: pad to tile multiples and transpose to [K_pad, N_pad].

    Call once per parameter set (e.g. at init) and reuse the result; this keeps
    the full-weight HBM read/write out of the per-forward path.
    """
    out_features, in_features = weight.shape
    dtype = dtype if dtype is not None else weight.dtype
    tn, tk = _select_nk_tiles(out_features, in_features)
    n_pad = _round_up(out_features, tn)
    k_pad = _round_up(in_features, tk)

    w_t = jnp.pad(weight.astype(dtype),
                  ((0, n_pad - out_features), (0, k_pad - in_features))).T  # [K_pad, N_pad]
    w_t = jnp.asarray(w_t)

    if bias is None:
        b = jnp.zeros((1, n_pad), dtype)
    else:
        b = jnp.pad(bias.astype(dtype), (0, n_pad - out_features)).reshape(1, n_pad)

    return w_t, b, out_features, in_features, tn, tk


@functools.partial(jax.jit,
                   static_argnames=("out_features", "in_features", "tn", "tk"))
def _linear_forward_prepped(x, w_t, b, *, out_features, in_features, tn, tk):
    lead_shape = x.shape[:-1]
    m = 1
    for d in lead_shape:
        m *= d
    x2 = x.reshape(m, in_features)

    k_pad, n_pad = w_t.shape
    dtype = x.dtype
    dbytes = jnp.dtype(dtype).itemsize

    sub = _sublane_multiple(dtype)
    tm = min(512, _round_up(m, sub))
    m_pad = _round_up(m, tm)

    # Only the activation is padded per call (weight/bias were prepped once).
    x_p = jnp.pad(x2, ((0, m_pad - m), (0, k_pad - in_features)))

    grid_m = m_pad // tm
    grid_n = n_pad // tn
    grid_k = k_pad // tk

    # Double-buffered input/output tiles (+ f32 accumulator if K is tiled).
    vmem_need = (2 * (tm * tk + tk * tn + tn) * dbytes
                 + 2 * tm * tn * dbytes
                 + (tm * tn * 4 if grid_k > 1 else 0))
    vmem_limit = int(min(max(vmem_need + (8 << 20), 32 << 20), _vmem_budget_bytes()))

    cost = pl.CostEstimate(
        flops=2 * m_pad * n_pad * k_pad,
        transcendentals=0,
        bytes_accessed=int(m_pad * k_pad * dbytes * grid_n      # x re-read per N tile
                           + k_pad * n_pad * dbytes * grid_m    # W re-read per M tile
                           + n_pad * dbytes * grid_m            # bias
                           + m_pad * n_pad * dbytes),           # output
    )

    if grid_k == 1:
        out = pl.pallas_call(
            _linear_kernel_single_k,
            out_shape=jax.ShapeDtypeStruct((m_pad, n_pad), dtype),
            grid_spec=pltpu.PrefetchScalarGridSpec(
                num_scalar_prefetch=0,
                grid=(grid_m, grid_n),
                in_specs=[
                    pl.BlockSpec((tm, tk), lambda i, j: (i, 0)),   # x  [M, K]
                    pl.BlockSpec((tk, tn), lambda i, j: (0, j)),   # Wt [K, N]
                    pl.BlockSpec((1, tn), lambda i, j: (0, j)),    # b  [1, N]
                ],
                out_specs=pl.BlockSpec((tm, tn), lambda i, j: (i, j)),
            ),
            compiler_params=pltpu.CompilerParams(
                dimension_semantics=("parallel", "parallel"),
                vmem_limit_bytes=vmem_limit,
            ),
            cost_estimate=cost,
        )(x_p, w_t, b)
    else:
        out = pl.pallas_call(
            _linear_kernel_acc,
            out_shape=jax.ShapeDtypeStruct((m_pad, n_pad), dtype),
            grid_spec=pltpu.PrefetchScalarGridSpec(
                num_scalar_prefetch=0,
                grid=(grid_m, grid_n, grid_k),
                in_specs=[
                    pl.BlockSpec((tm, tk), lambda i, j, kk: (i, kk)),  # x  [M, K]
                    pl.BlockSpec((tk, tn), lambda i, j, kk: (kk, j)),  # Wt [K, N]
                    pl.BlockSpec((1, tn), lambda i, j, kk: (0, j)),    # b  [1, N]
                ],
                out_specs=pl.BlockSpec((tm, tn), lambda i, j, kk: (i, j)),
                scratch_shapes=[pltpu.VMEM((tm, tn), jnp.float32)],
            ),
            compiler_params=pltpu.CompilerParams(
                dimension_semantics=("parallel", "parallel", "arbitrary"),
                vmem_limit_bytes=vmem_limit,
            ),
            cost_estimate=cost,
        )(x_p, w_t, b)

    out = out[:m, :out_features]
    return out.reshape(*lead_shape, out_features)


def linear_apply(x, weight, bias=None):
    """Matches PyTorch Linear.forward (bias optional).

    Convenience wrapper: preps the weight on every call. For repeated use,
    call prepare_linear_params once and reuse its outputs with
    _linear_forward_prepped directly.
    """
    w_t, b, nf, kf, tn, tk = prepare_linear_params(weight, bias, dtype=x.dtype)
    return _linear_forward_prepped(x, w_t, b, out_features=nf, in_features=kf,
                                   tn=tn, tk=tk)


def init_linear_params(key, in_features, out_features,
                       init_mode="kaiming_normal",
                       init_weight=1.0, init_bias=0.0,
                       dtype=jnp.float32):
    """Deterministic re-implementation of weight_init from the PyTorch module."""
    kw, kb = jax.random.split(key)

    def _init(k, shape, fan_in, fan_out):
        if init_mode == "xavier_uniform":
            return jnp.sqrt(6.0 / (fan_in + fan_out)) * (
                jax.random.uniform(k, shape, dtype) * 2.0 - 1.0)
        if init_mode == "xavier_normal":
            return jnp.sqrt(2.0 / (fan_in + fan_out)) * jax.random.normal(k, shape, dtype)
        if init_mode == "kaiming_uniform":
            return jnp.sqrt(3.0 / fan_in) * (
                jax.random.uniform(k, shape, dtype) * 2.0 - 1.0)
        if init_mode == "kaiming_normal":
            return jnp.sqrt(1.0 / fan_in) * jax.random.normal(k, shape, dtype)
        raise ValueError(f'Invalid init mode "{init_mode}"')

    weight = _init(kw, (out_features, in_features), in_features, out_features) * init_weight
    bias = _init(kb, (out_features,), in_features, out_features) * init_bias
    return weight, bias


if __name__ == "__main__":
    key = jax.random.PRNGKey(0)
    k_x, k_p = jax.random.split(key)

    def _ref(x, w, b):
        y = jnp.einsum("...k,nk->...n", x, w,
                       precision=jax.lax.Precision.HIGHEST,
                       preferred_element_type=jnp.float32).astype(x.dtype)
        return y if b is None else y + b

    # --- Test 1: small shape from the module, with bias (single-K kernel) ---
    batch, in_features, out_features = 16, 32, 64
    x = jax.random.normal(k_x, (batch, in_features), jnp.float32)
    weight, bias = init_linear_params(k_p, in_features, out_features)

    # Prep once (outside the per-call path), then forward.
    w_t, b_p, nf, kf, tn, tk = prepare_linear_params(weight, bias, dtype=x.dtype)
    y = _linear_forward_prepped(x, w_t, b_p, out_features=nf, in_features=kf,
                                tn=tn, tk=tk)
    jax.block_until_ready(y)
    assert y.shape == (batch, out_features)
    assert jnp.allclose(y, _ref(x, weight, bias), atol=1e-4, rtol=1e-4)

    # --- Test 2: ragged shape with leading dims, no bias (single-K kernel) ---
    x2 = jax.random.normal(k_x, (2, 3, 300, 130), jnp.float32)
    w2, _ = init_linear_params(k_p, 130, 200)
    y2 = linear_apply(x2, w2, None)
    jax.block_until_ready(y2)
    assert y2.shape == (2, 3, 300, 200)
    assert jnp.allclose(y2, _ref(x2, w2, None), atol=1e-4, rtol=1e-4)

    # --- Test 3: K > tk exercises the accumulator (multi-K) kernel ---
    x3 = jax.random.normal(k_x, (24, 1300), jnp.float32)
    w3, b3 = init_linear_params(k_p, 1300, 192)
    y3 = linear_apply(x3, w3, b3)
    jax.block_until_ready(y3)
    assert y3.shape == (24, 192)
    assert jnp.allclose(y3, _ref(x3, w3, b3), atol=1e-4, rtol=1e-4)

    print("KERNEL_OK")
</pallas_src>

<mosaic_0001>
module attributes {stable_mosaic.version = 11 : i64} {
  func.func @_linear_kernel_single_k(%arg0: i32, %arg1: i32, %arg2: memref<16x128xf32, #tpu.memory_space<vmem>>, %arg3: memref<128x128xf32, #tpu.memory_space<vmem>>, %arg4: memref<1x128xf32, #tpu.memory_space<vmem>>, %arg5: memref<16x128xf32, #tpu.memory_space<vmem>>) attributes {dimension_semantics = [#tpu.dimension_semantics<parallel>, #tpu.dimension_semantics<parallel>], iteration_bounds = array<i64: 1, 1>, scalar_prefetch = 0 : i64, scratch_operands = 0 : i64, tpu.core_type = #tpu.core_type<tc>, window_params = [{transform_indices = @transform_0, window_bounds = array<i64: 16, 128>}, {transform_indices = @transform_1, window_bounds = array<i64: 128, 128>}, {transform_indices = @transform_2, window_bounds = array<i64: 1, 128>}, {transform_indices = @transform_3, window_bounds = array<i64: 16, 128>}]} {
    %c0 = arith.constant 0 : index
    %c0_0 = arith.constant 0 : index
    %0 = vector.load %arg2[%c0, %c0_0] : memref<16x128xf32, #tpu.memory_space<vmem>>, vector<16x128xf32>
    %c0_1 = arith.constant 0 : index
    %c0_2 = arith.constant 0 : index
    %1 = vector.load %arg3[%c0_1, %c0_2] : memref<128x128xf32, #tpu.memory_space<vmem>>, vector<128x128xf32>
    %cst = arith.constant dense<0.000000e+00> : vector<16x128xf32>
    %2 = tpu.matmul %0, %1, %cst {dimension_numbers = #tpu.dot_dimension_numbers<[1], [0], [0], [1], [0, 0, 1, 1], [], []>} : vector<16x128xf32>, vector<128x128xf32>, vector<16x128xf32> -> vector<16x128xf32>
    %c0_3 = arith.constant 0 : index
    %c0_4 = arith.constant 0 : index
    %3 = vector.load %arg4[%c0_3, %c0_4] : memref<1x128xf32, #tpu.memory_space<vmem>>, vector<1x128xf32>
    %4 = vector.broadcast %3 : vector<1x128xf32> to vector<16x128xf32>
    %5 = arith.addf %2, %4 : vector<16x128xf32>
    %c0_5 = arith.constant 0 : index
    %c0_6 = arith.constant 0 : index
    %6 = vector.load %arg5[%c0_5, %c0_6] : memref<16x128xf32, #tpu.memory_space<vmem>>, vector<16x128xf32>
    tpu.vector_store %arg5[%c0_5, %c0_6], %5 {strides = array<i32>} : memref<16x128xf32, #tpu.memory_space<vmem>>, vector<16x128xf32>,
    return
  }
  func.func @transform_0(%arg0: i32, %arg1: i32) -> (i32, i32) {
    %c0_i32 = arith.constant 0 : i32
    %c0_i32_0 = arith.constant 0 : i32
    return %arg0, %c0_i32 : i32, i32
  }
  func.func @transform_1(%arg0: i32, %arg1: i32) -> (i32, i32) {
    %c0_i32 = arith.constant 0 : i32
    %c0_i32_0 = arith.constant 0 : i32
    return %c0_i32, %arg1 : i32, i32
  }
  func.func @transform_2(%arg0: i32, %arg1: i32) -> (i32, i32) {
    %c0_i32 = arith.constant 0 : i32
    %c0_i32_0 = arith.constant 0 : i32
    return %c0_i32, %arg1 : i32, i32
  }
  func.func @transform_3(%arg0: i32, %arg1: i32) -> (i32, i32) {
    %c0_i32 = arith.constant 0 : i32
    return %arg0, %arg1 : i32, i32
  }
}

</mosaic_0001>

<llo_original>
// kernel: _linear_forward_prepped.1
$region0: #{_linear_forward_prepped.1}
  #allocation0 [shape = 'u32[]', space=smem, size = 0x4, offset = 0x4, fixed_abs, tag = 'smem constant byte address 0x4 - core index']
  #allocation1 [shape = 'u32[144,128]{1,0:T(1,128)}', space=vmem, size = 0x12000, scoped, tag = 'internal scratch']
  %s0 = inlined_call_operand.vmem [shape: f32[16,128], index: 0, kind: input, shape index: {}]
  %s1 = inlined_call_operand.hbm [shape: f32[128,128], index: 1, kind: input, shape index: {}]
  %s2 = inlined_call_operand.vmem [shape: f32[1,128], index: 2, kind: input, shape index: {}]
  %s3 = inlined_call_operand.hbm [shape: f32[16,128], index: 3, kind: output, shape index: {}]
  %s4 = sld [smem:[#allocation0]]
  $region26: #{_linear_forward_prepped.1} parent=0
    _
  %s6 = ssub.s32 1, %s4
  %s7 = scalar_select 0, %s6, %s4
  $region1: #{_linear_forward_prepped.1} parent=0
    #allocation2 [shape = 'u8[65536]{0}', space=vmem, size = 0x10000, scoped, tag = 'input window, operand 1, single buffered']
    #allocation3 [shape = 's32[1]{0}', space=sflag, size = 0x4, scoped, tag = 'scoped memory for _linear_forward_prepped.1']
    #allocation4 [shape = 's32[1]{0}', space=sflag, size = 0x4, scoped, tag = 'scoped memory for _linear_forward_prepped.1']
    #allocation5 [shape = 'u8[8192]{0}', space=vmem, size = 0x2000, scoped, tag = 'output window, operand 0, single buffered']
    %8 = vsyncpa [#allocation3], 0
    %9 = vsyncpa [#allocation4], 0
    // Predicated region
    $region2: #{_linear_forward_prepped.1} parent=1 // pred_check
      _
    $region3: #{_linear_forward_prepped.1} parent=1 // pred_check_branch
      %11 = sbr.rel (0) target = $region5
    $region4: #{_linear_forward_prepped.1} parent=1 // pred_region
      _
    $region5: #{_linear_forward_prepped.1} parent=1 // pred_fallthru
      _
    // Predicated region
    $region6: #{_linear_forward_prepped.1} parent=1 // pred_check
      _
    $region7: #{_linear_forward_prepped.1} parent=1 // pred_check_branch
      %13 = sbr.rel (0) target = $region9
    $region8: #{_linear_forward_prepped.1} parent=1 // pred_region
      %s15 = ssub.s32 2048, 2048
      %16 = vsyncadd [#allocation3], %s15
      %s17 = sshll.u32 [#allocation2], 4
      %s18 = int_to_ptr.vmem [resolvable:$true] %s17
      %23 = dma.hbm_to_vmem [thread:$0]  %s1, 2048, %s18, [#allocation3], 128, 128, 8
    $region9: #{_linear_forward_prepped.1} parent=1 // pred_fallthru
      _
    // Predicated region
    $region10: #{_linear_forward_prepped.1} parent=1 // pred_check
      _
    $region11: #{_linear_forward_prepped.1} parent=1 // pred_check_branch
      %25 = sbr.rel (0) target = $region13
    $region12: #{_linear_forward_prepped.1} parent=1 // pred_region
      _
    $region13: #{_linear_forward_prepped.1} parent=1 // pred_fallthru
      _
    // Predicated region
    $region14: #{_linear_forward_prepped.1} parent=1 // pred_check
      _
    $region15: #{_linear_forward_prepped.1} parent=1 // pred_check_branch
      %27 = sbr.rel (0) target = $region17
    $region16: #{_linear_forward_prepped.1} parent=1 // pred_region
      %28 = dma.done [#allocation3], 2048
    $region17: #{_linear_forward_prepped.1} parent=1 // pred_fallthru
      _
    %v29 = vld [vmem:[%s0] sm:$0xff]
    %v30 = vld [vmem:[%s0 + $0x8] sm:$0xff]
    %v31 = vld [vmem:[#allocation2] sm:$0xff]
    %v32 = vld [vmem:[#allocation2 + $0x8] sm:$0xff]
    %v33 = vld [vmem:[#allocation2 + $0x10] sm:$0xff]
    %v34 = vld [vmem:[#allocation2 + $0x18] sm:$0xff]
    %v35 = vld [vmem:[#allocation2 + $0x20] sm:$0xff]
    %v36 = vld [vmem:[#allocation2 + $0x28] sm:$0xff]
    %v37 = vld [vmem:[#allocation2 + $0x30] sm:$0xff]
    %v38 = vld [vmem:[#allocation2 + $0x38] sm:$0xff]
    %v39 = vld [vmem:[#allocation2 + $0x40] sm:$0xff]
    %v40 = vld [vmem:[#allocation2 + $0x48] sm:$0xff]
    %v41 = vld [vmem:[#allocation2 + $0x50] sm:$0xff]
    %v42 = vld [vmem:[#allocation2 + $0x58] sm:$0xff]
    %v43 = vld [vmem:[#allocation2 + $0x60] sm:$0xff]
    %v44 = vld [vmem:[#allocation2 + $0x68] sm:$0xff]
    %v45 = vld [vmem:[#allocation2 + $0x70] sm:$0xff]
    %v46 = vld [vmem:[#allocation2 + $0x78] sm:$0xff]
    %v47 = vld [vmem:[%s2] sm:$0x1]
    %v49 = vlaneseq
    %v50 = vshrl.u32 %v49, 7
    %v51 = vsub.s32 0, %v50
    %v52 = vrot.slane %v47, %v51
    %54 = vmatprep.subr.mxu0 0.0
    %55 = vmatpush1.msra.mxu0 %v31
    %56 = vmatprep.subr.mxu0 0.0
    %57 = vmatpush1.msra.mxu0 %v32
    %58 = vmatprep.subr.mxu0 0.0
    %59 = vmatpush1.msra.mxu0 %v33
    %60 = vmatprep.subr.mxu0 0.0
    %61 = vmatpush1.msra.mxu0 %v34
    %62 = vmatprep.subr.mxu0 0.0
    %63 = vmatpush1.msra.mxu0 %v35
    %64 = vmatprep.subr.mxu0 0.0
    %65 = vmatpush1.msra.mxu0 %v36
    %66 = vmatprep.subr.mxu0 0.0
    %67 = vmatpush1.msra.mxu0 %v37
    %68 = vmatprep.subr.mxu0 0.0
    %69 = vmatpush1.msra.mxu0 %v38
    %70 = vmatprep.subr.mxu0 0.0
    %71 = vmatpush1.msra.mxu0 %v39
    %72 = vmatprep.subr.mxu0 0.0
    %73 = vmatpush1.msra.mxu0 %v40
    %74 = vmatprep.subr.mxu0 0.0
    %75 = vmatpush1.msra.mxu0 %v41
    %76 = vmatprep.subr.mxu0 0.0
    %77 = vmatpush1.msra.mxu0 %v42
    %78 = vmatprep.subr.mxu0 0.0
    %79 = vmatpush1.msra.mxu0 %v43
    %80 = vmatprep.subr.mxu0 0.0
    %81 = vmatpush1.msra.mxu0 %v44
    %82 = vmatprep.subr.mxu0 0.0
    %83 = vmatpush1.msra.mxu0 %v45
    %84 = vmatprep.subr.mxu0 0.0
    %85 = vmatpush1.msra.mxu0 %v46
    %86 = vmatprep.subr.mxu0 0.0
    %87 = vmatpush1.msra.mxu0 0.0
    %88 = vmatprep.subr.mxu0 0.0
    %89 = vmatpush1.msra.mxu0 0.0
    %90 = vmatprep.subr.mxu0 0.0
    %91 = vmatpush1.msra.mxu0 0.0
    %92 = vmatprep.subr.mxu0 0.0
    %93 = vmatpush1.msra.mxu0 0.0
    %94 = vmatprep.subr.mxu0 0.0
    %95 = vmatpush1.msra.mxu0 0.0
    %96 = vmatprep.subr.mxu0 0.0
    %97 = vmatpush1.msra.mxu0 0.0
    %98 = vmatprep.subr.mxu0 0.0
    %99 = vmatpush1.msra.mxu0 0.0
    %100 = vmatprep.subr.mxu0 0.0
    %101 = vmatpush1.msra.mxu0 0.0
    %102 = vmatprep.subr.mxu0 0.0
    %103 = vmatpush1.msra.mxu0 0.0
    %104 = vmatprep.subr.mxu0 0.0
    %105 = vmatpush1.msra.mxu0 0.0
    %106 = vmatprep.subr.mxu0 0.0
    %107 = vmatpush1.msra.mxu0 0.0
    %108 = vmatprep.subr.mxu0 0.0
    %109 = vmatpush1.msra.mxu0 0.0
    %110 = vmatprep.subr.mxu0 0.0
    %111 = vmatpush1.msra.mxu0 0.0
    %112 = vmatprep.subr.mxu0 0.0
    %113 = vmatpush1.msra.mxu0 0.0
    %114 = vmatprep.subr.mxu0 0.0
    %115 = vmatpush1.msra.mxu0 0.0
    %116 = vmatprep.subr.mxu0 0.0
    %117 = vmatpush1.msra.mxu0 0.0
    %118 = vmatprep.mubr.f32.mxu0 0.0
    %119 = vmatmul.mubr.f32.gmra.mrb[0].mxu0 %v29
    %v120 = vpop.f32.mrb[0].mxu0
    %v121 = vadd.f32 %v52, %v120
    %v122 = vpop.f32.mrb[0].mxu0
    %123 = vmatprep.mubr.f32.mxu0 0.0
    %124 = vmatmul.mubr.f32.gmra.mrb[0].mxu0 %v30
    %v125 = vpop.f32.mrb[0].mxu0
    %v126 = vadd.f32 %v52, %v125
    %v127 = vpop.f32.mrb[0].mxu0
    %128 = vdwg.mxu0
    %129 = vst [vmem:[#allocation5] sm:$0xff] %v121
    %130 = vst [vmem:[#allocation5 + $0x8] sm:$0xff] %v126
    // Predicated region
    $region18: #{_linear_forward_prepped.1} parent=1 // pred_check
      _
    $region19: #{_linear_forward_prepped.1} parent=1 // pred_check_branch
      %132 = sbr.rel (0) target = $region21
    $region20: #{_linear_forward_prepped.1} parent=1 // pred_region
      %s134 = ssub.s32 256, 256
      %135 = vsyncadd [#allocation4], %s134
      %s136 = sshll.u32 [#allocation5], 4
      %s137 = int_to_ptr.vmem [resolvable:$true] %s136
      %142 = dma.vmem_to_hbm [thread:$0]  %s137, 256, %s3, [#allocation4], 128, 128, 8
    $region21: #{_linear_forward_prepped.1} parent=1 // pred_fallthru
      _
    // Predicated region
    $region22: #{_linear_forward_prepped.1} parent=1 // pred_check
      _
    $region23: #{_linear_forward_prepped.1} parent=1 // pred_check_branch
      %144 = sbr.rel (0) target = $region25
    $region24: #{_linear_forward_prepped.1} parent=1 // pred_region
      %145 = dma.done [#allocation4], 256
    $region25: #{_linear_forward_prepped.1} parent=1 // pred_fallthru
      _
    %146 = vsyncpa [#allocation3], 1
    %147 = vsyncpa [#allocation4], 1

</llo_original>
